<compile_context>
chip_gen: v7x
topology: tpu7x:2x2x1
jax: 0.10.0
libtpu: 0.0.40
codegen_flags: <defaults>
</compile_context>

<pallas_src>
import functools

import jax
import jax.numpy as jnp
from jax.experimental import pallas as pl
from jax.experimental.pallas import tpu as pltpu

LATENT = 10   # latent size is hard-coded to 10 in the reference module
FEAT = 128    # padded feature width (one full lane vreg)


def _round_up(n, m):
    return (n + m - 1) // m * m


# --------------------------------------------------------------------------
# Kernel: whole forward pass for one batch tile, everything VMEM-resident.
# --------------------------------------------------------------------------
def _vae_kernel(x_ref, coef_ref, w_ref, b_ref, out_ref, lat_ref):
    f32 = jnp.float32
    x = x_ref[...]                                                  # [TB, 128]

    # ---- encoder: Linear(input,50) -> ReLU -> Linear(50,hidden) -> ReLU
    h = jnp.dot(x, w_ref[0], preferred_element_type=f32) + b_ref[0]
    h = jnp.maximum(h, 0.0)
    h = jnp.dot(h, w_ref[1], preferred_element_type=f32) + b_ref[1]
    h = jnp.maximum(h, 0.0)

    # ---- fused latent heads: lanes 0..9 = mu, lanes 10..19 = sigma, rest 0
    head = jnp.dot(h, w_ref[2], preferred_element_type=f32) + b_ref[2]

    # ---- reparameterization folded into the decoder matmul:
    #   coef = [1]*10 | eps | 0...   =>  zz lanes 0..9 = mu, 10..19 = sigma*eps
    #   w_ref[3] has (wh@w3) duplicated in rows 0..9 and 10..19, so
    #   zz @ w_ref[3] == (mu + sigma*eps) @ (wh @ w3)
    zz = head * coef_ref[...]

    # ---- decoder: fused hid2out+latent2hidden[0] -> ReLU -> Linear -> ReLU
    nh = jnp.dot(zz, w_ref[3], preferred_element_type=f32) + b_ref[3]
    nh = jnp.maximum(nh, 0.0)
    nh = jnp.dot(nh, w_ref[4], preferred_element_type=f32) + b_ref[4]
    nh = jnp.maximum(nh, 0.0)

    # ---- sigmoid: exp on EUP, approximate reciprocal on EUP (VPU stays free)
    out_ref[...] = pl.reciprocal(1.0 + jnp.exp(-nh), approx=True)
    lat_ref[...] = head                                             # mu|sigma|0


# --------------------------------------------------------------------------
# Parameter construction / packing (wrapper side, done once)
# --------------------------------------------------------------------------
def init_vae_params(key, input_dim, hidden_dim):
    """PyTorch-style init; weights stored as [in, out] (transposed vs torch)."""
    def linear(k, fan_in, fan_out):
        kw, kb = jax.random.split(k)
        bound = 1.0 / jnp.sqrt(jnp.float32(fan_in))
        w = jax.random.uniform(kw, (fan_in, fan_out), jnp.float32, -bound, bound)
        b = jax.random.uniform(kb, (1, fan_out), jnp.float32, -bound, bound)
        return w, b

    ks = jax.random.split(key, 7)
    p = {}
    p["w1"], p["b1"] = linear(ks[0], input_dim, 50)        # in2hidden[0]
    p["w2"], p["b2"] = linear(ks[1], 50, hidden_dim)       # in2hidden[2]
    p["wmu"], p["bmu"] = linear(ks[2], hidden_dim, LATENT) # hid_2mu
    p["wsg"], p["bsg"] = linear(ks[3], hidden_dim, LATENT) # hid_2sigma
    p["wh"], p["bh"] = linear(ks[4], LATENT, hidden_dim)   # hid2out
    p["w3"], p["b3"] = linear(ks[5], hidden_dim, 50)       # latent2hidden[0]
    p["w4"], p["b4"] = linear(ks[6], 50, input_dim)        # latent2hidden[2]
    return p


def pack_vae_params(params):
    """Fuse + zero-pad all weights/biases into two VMEM-friendly blobs."""
    hp = jax.lax.Precision.HIGHEST
    # hid2out fused into latent2hidden[0] (no activation between them)
    whw3 = jnp.dot(params["wh"], params["w3"], precision=hp)                 # [10, 50]
    bhw3 = jnp.dot(params["bh"], params["w3"], precision=hp) + params["b3"]  # [1, 50]
    # fused mu|sigma heads
    wms = jnp.concatenate([params["wmu"], params["wsg"]], axis=1)            # [hid, 20]
    bms = jnp.concatenate([params["bmu"], params["bsg"]], axis=1)            # [1, 20]

    def pad_w(w):
        return jnp.zeros((FEAT, FEAT), jnp.float32).at[:w.shape[0], :w.shape[1]].set(w)

    def pad_b(b):
        return jnp.zeros((1, FEAT), jnp.float32).at[:, :b.shape[1]].set(b)

    # decoder weight with the reparameterization folded in (rows duplicated
    # for the mu lanes and the sigma*eps lanes)
    wdec = jnp.zeros((FEAT, FEAT), jnp.float32)
    wdec = wdec.at[:LATENT, :whw3.shape[1]].set(whw3)
    wdec = wdec.at[LATENT:2 * LATENT, :whw3.shape[1]].set(whw3)

    w_blob = jnp.stack([pad_w(params["w1"]), pad_w(params["w2"]),
                        pad_w(wms), wdec, pad_w(params["w4"])])              # [5,128,128]
    b_blob = jnp.stack([pad_b(params["b1"]), pad_b(params["b2"]),
                        pad_b(bms), pad_b(bhw3), pad_b(params["b4"])])       # [5,1,128]
    return w_blob, b_blob


# --------------------------------------------------------------------------
# Forward wrapper
# --------------------------------------------------------------------------
@functools.partial(jax.jit, static_argnames=("input_dim",))
def vae_forward(x, eps, w_blob, b_blob, *, input_dim):
    """Full VAE forward in one pallas_call. Returns (x_recon, mu, sigma)."""
    B = x.shape[0]
    tile_b = min(256, _round_up(B, 8))
    b_pad = _round_up(B, tile_b)

    # lane-dense padded inputs
    x_p = jnp.zeros((b_pad, FEAT), jnp.float32).at[:B, :input_dim].set(x)
    coef = jnp.zeros((b_pad, FEAT), jnp.float32)
    coef = coef.at[:, :LATENT].set(1.0)                 # mu lanes pass through
    coef = coef.at[:B, LATENT:2 * LATENT].set(eps)      # sigma lanes scaled by eps

    row_spec = pl.BlockSpec((tile_b, FEAT), lambda i: (i, 0))
    w_spec = pl.BlockSpec((5, FEAT, FEAT), lambda i: (0, 0, 0))   # resident weights
    b_spec = pl.BlockSpec((5, 1, FEAT), lambda i: (0, 0, 0))

    recon_p, head = pl.pallas_call(
        _vae_kernel,
        out_shape=(jax.ShapeDtypeStruct((b_pad, FEAT), jnp.float32),   # recon (padded)
                   jax.ShapeDtypeStruct((b_pad, FEAT), jnp.float32)),  # mu|sigma (padded)
        grid=(b_pad // tile_b,),
        in_specs=[row_spec, row_spec, w_spec, b_spec],
        out_specs=(row_spec, row_spec),
        compiler_params=pltpu.CompilerParams(
            dimension_semantics=("parallel",)),
    )(x_p, coef, w_blob, b_blob)

    recon = recon_p[:B, :input_dim]
    mu = head[:B, :LATENT]
    sigma = head[:B, LATENT:2 * LATENT]
    return recon, mu, sigma


# --------------------------------------------------------------------------
# Pure-JAX reference (mirrors the original PyTorch module, no fusion)
# --------------------------------------------------------------------------
def vae_forward_ref(x, eps, params):
    h = jnp.maximum(x @ params["w1"] + params["b1"], 0.0)
    h = jnp.maximum(h @ params["w2"] + params["b2"], 0.0)
    mu = h @ params["wmu"] + params["bmu"]
    sigma = h @ params["wsg"] + params["bsg"]
    z = mu + sigma * eps
    nh = z @ params["wh"] + params["bh"]
    nh = jnp.maximum(nh @ params["w3"] + params["b3"], 0.0)
    nh = jnp.maximum(nh @ params["w4"] + params["b4"], 0.0)
    return jax.nn.sigmoid(nh), mu, sigma


if __name__ == "__main__":
    key = jax.random.PRNGKey(0)
    k_params, k_x, k_eps = jax.random.split(key, 3)

    batch = 8
    input_dim = 64
    hidden_dim = 32
    # latent_dim of the original module is unused (latent size hard-coded to 10)

    params = init_vae_params(k_params, input_dim, hidden_dim)
    x = jax.random.uniform(k_x, (batch, input_dim), jnp.float32)
    # epsilon ~ N(0,1): host-side stand-in for torch.randn_like
    eps = jax.random.normal(k_eps, (batch, LATENT), jnp.float32)

    w_blob, b_blob = pack_vae_params(params)

    x_recon, mu, sigma = vae_forward(x, eps, w_blob, b_blob, input_dim=input_dim)
    jax.block_until_ready((x_recon, mu, sigma))

    # Correctness check against the unfused pure-JAX reference.
    # mu/sigma follow identical math (exact); the reconstruction tolerance
    # covers the wh@w3 fusion reassociation and the approximate EUP reciprocal.
    x_ref, mu_ref, sigma_ref = vae_forward_ref(x, eps, params)
    assert jnp.allclose(mu, mu_ref, atol=1e-4, rtol=1e-4)
    assert jnp.allclose(sigma, sigma_ref, atol=1e-4, rtol=1e-4)
    assert jnp.allclose(x_recon, x_ref, atol=1e-3, rtol=1e-3)

    print("KERNEL_OK")
</pallas_src>

<mosaic_0001>
module attributes {stable_mosaic.version = 11 : i64} {
  func.func @_vae_kernel(%arg0: i32, %arg1: memref<8x128xf32, #tpu.memory_space<vmem>>, %arg2: memref<8x128xf32, #tpu.memory_space<vmem>>, %arg3: memref<5x128x128xf32, #tpu.memory_space<vmem>>, %arg4: memref<5x1x128xf32, #tpu.memory_space<vmem>>, %arg5: memref<8x128xf32, #tpu.memory_space<vmem>>, %arg6: memref<8x128xf32, #tpu.memory_space<vmem>>) attributes {dimension_semantics = [#tpu.dimension_semantics<parallel>], iteration_bounds = array<i64: 1>, scalar_prefetch = 0 : i64, scratch_operands = 0 : i64, tpu.core_type = #tpu.core_type<tc>, window_params = [{transform_indices = @transform_0, window_bounds = array<i64: 8, 128>}, {transform_indices = @transform_1, window_bounds = array<i64: 8, 128>}, {pipeline_mode = #tpu.pipeline_mode<synchronous>, transform_indices = @transform_2, window_bounds = array<i64: 5, 128, 128>}, {pipeline_mode = #tpu.pipeline_mode<synchronous>, transform_indices = @transform_3, window_bounds = array<i64: 5, 1, 128>}, {transform_indices = @transform_4, window_bounds = array<i64: 8, 128>}, {transform_indices = @transform_5, window_bounds = array<i64: 8, 128>}]} {
    %c0 = arith.constant 0 : index
    %c0_0 = arith.constant 0 : index
    %0 = vector.load %arg1[%c0, %c0_0] : memref<8x128xf32, #tpu.memory_space<vmem>>, vector<8x128xf32>
    %c0_1 = arith.constant 0 : index
    %c0_2 = arith.constant 0 : index
    %c0_3 = arith.constant 0 : index
    %1 = vector.load %arg3[%c0_1, %c0_2, %c0_3] : memref<5x128x128xf32, #tpu.memory_space<vmem>>, vector<1x128x128xf32>
    %2 = vector.shape_cast %1 : vector<1x128x128xf32> to vector<128x128xf32>
    %cst = arith.constant dense<0.000000e+00> : vector<8x128xf32>
    %3 = tpu.matmul %0, %2, %cst {dimension_numbers = #tpu.dot_dimension_numbers<[1], [0], [0], [1], [0, 0, 1, 1], [], []>} : vector<8x128xf32>, vector<128x128xf32>, vector<8x128xf32> -> vector<8x128xf32>
    %c0_4 = arith.constant 0 : index
    %c0_5 = arith.constant 0 : index
    %c0_6 = arith.constant 0 : index
    %4 = vector.load %arg4[%c0_4, %c0_5, %c0_6] : memref<5x1x128xf32, #tpu.memory_space<vmem>>, vector<1x1x128xf32>
    %5 = vector.shape_cast %4 : vector<1x1x128xf32> to vector<1x128xf32>
    %6 = vector.broadcast %5 : vector<1x128xf32> to vector<8x128xf32>
    %7 = arith.addf %3, %6 : vector<8x128xf32>
    %cst_7 = arith.constant 0.000000e+00 : f32
    %8 = vector.broadcast %cst_7 : f32 to vector<8x128xf32>
    %9 = arith.maximumf %7, %8 : vector<8x128xf32>
    %c1 = arith.constant 1 : index
    %c0_8 = arith.constant 0 : index
    %c0_9 = arith.constant 0 : index
    %10 = vector.load %arg3[%c1, %c0_8, %c0_9] : memref<5x128x128xf32, #tpu.memory_space<vmem>>, vector<1x128x128xf32>
    %11 = vector.shape_cast %10 : vector<1x128x128xf32> to vector<128x128xf32>
    %cst_10 = arith.constant dense<0.000000e+00> : vector<8x128xf32>
    %12 = tpu.matmul %9, %11, %cst_10 {dimension_numbers = #tpu.dot_dimension_numbers<[1], [0], [0], [1], [0, 0, 1, 1], [], []>} : vector<8x128xf32>, vector<128x128xf32>, vector<8x128xf32> -> vector<8x128xf32>
    %c1_11 = arith.constant 1 : index
    %c0_12 = arith.constant 0 : index
    %c0_13 = arith.constant 0 : index
    %13 = vector.load %arg4[%c1_11, %c0_12, %c0_13] : memref<5x1x128xf32, #tpu.memory_space<vmem>>, vector<1x1x128xf32>
    %14 = vector.shape_cast %13 : vector<1x1x128xf32> to vector<1x128xf32>
    %15 = vector.broadcast %14 : vector<1x128xf32> to vector<8x128xf32>
    %16 = arith.addf %12, %15 : vector<8x128xf32>
    %cst_14 = arith.constant 0.000000e+00 : f32
    %17 = vector.broadcast %cst_14 : f32 to vector<8x128xf32>
    %18 = arith.maximumf %16, %17 : vector<8x128xf32>
    %c2 = arith.constant 2 : index
    %c0_15 = arith.constant 0 : index
    %c0_16 = arith.constant 0 : index
    %19 = vector.load %arg3[%c2, %c0_15, %c0_16] : memref<5x128x128xf32, #tpu.memory_space<vmem>>, vector<1x128x128xf32>
    %20 = vector.shape_cast %19 : vector<1x128x128xf32> to vector<128x128xf32>
    %cst_17 = arith.constant dense<0.000000e+00> : vector<8x128xf32>
    %21 = tpu.matmul %18, %20, %cst_17 {dimension_numbers = #tpu.dot_dimension_numbers<[1], [0], [0], [1], [0, 0, 1, 1], [], []>} : vector<8x128xf32>, vector<128x128xf32>, vector<8x128xf32> -> vector<8x128xf32>
    %c2_18 = arith.constant 2 : index
    %c0_19 = arith.constant 0 : index
    %c0_20 = arith.constant 0 : index
    %22 = vector.load %arg4[%c2_18, %c0_19, %c0_20] : memref<5x1x128xf32, #tpu.memory_space<vmem>>, vector<1x1x128xf32>
    %23 = vector.shape_cast %22 : vector<1x1x128xf32> to vector<1x128xf32>
    %24 = vector.broadcast %23 : vector<1x128xf32> to vector<8x128xf32>
    %25 = arith.addf %21, %24 : vector<8x128xf32>
    %c0_21 = arith.constant 0 : index
    %c0_22 = arith.constant 0 : index
    %26 = vector.load %arg2[%c0_21, %c0_22] : memref<8x128xf32, #tpu.memory_space<vmem>>, vector<8x128xf32>
    %27 = arith.mulf %25, %26 : vector<8x128xf32>
    %c3 = arith.constant 3 : index
    %c0_23 = arith.constant 0 : index
    %c0_24 = arith.constant 0 : index
    %28 = vector.load %arg3[%c3, %c0_23, %c0_24] : memref<5x128x128xf32, #tpu.memory_space<vmem>>, vector<1x128x128xf32>
    %29 = vector.shape_cast %28 : vector<1x128x128xf32> to vector<128x128xf32>
    %cst_25 = arith.constant dense<0.000000e+00> : vector<8x128xf32>
    %30 = tpu.matmul %27, %29, %cst_25 {dimension_numbers = #tpu.dot_dimension_numbers<[1], [0], [0], [1], [0, 0, 1, 1], [], []>} : vector<8x128xf32>, vector<128x128xf32>, vector<8x128xf32> -> vector<8x128xf32>
    %c3_26 = arith.constant 3 : index
    %c0_27 = arith.constant 0 : index
    %c0_28 = arith.constant 0 : index
    %31 = vector.load %arg4[%c3_26, %c0_27, %c0_28] : memref<5x1x128xf32, #tpu.memory_space<vmem>>, vector<1x1x128xf32>
    %32 = vector.shape_cast %31 : vector<1x1x128xf32> to vector<1x128xf32>
    %33 = vector.broadcast %32 : vector<1x128xf32> to vector<8x128xf32>
    %34 = arith.addf %30, %33 : vector<8x128xf32>
    %cst_29 = arith.constant 0.000000e+00 : f32
    %35 = vector.broadcast %cst_29 : f32 to vector<8x128xf32>
    %36 = arith.maximumf %34, %35 : vector<8x128xf32>
    %c4 = arith.constant 4 : index
    %c0_30 = arith.constant 0 : index
    %c0_31 = arith.constant 0 : index
    %37 = vector.load %arg3[%c4, %c0_30, %c0_31] : memref<5x128x128xf32, #tpu.memory_space<vmem>>, vector<1x128x128xf32>
    %38 = vector.shape_cast %37 : vector<1x128x128xf32> to vector<128x128xf32>
    %cst_32 = arith.constant dense<0.000000e+00> : vector<8x128xf32>
    %39 = tpu.matmul %36, %38, %cst_32 {dimension_numbers = #tpu.dot_dimension_numbers<[1], [0], [0], [1], [0, 0, 1, 1], [], []>} : vector<8x128xf32>, vector<128x128xf32>, vector<8x128xf32> -> vector<8x128xf32>
    %c4_33 = arith.constant 4 : index
    %c0_34 = arith.constant 0 : index
    %c0_35 = arith.constant 0 : index
    %40 = vector.load %arg4[%c4_33, %c0_34, %c0_35] : memref<5x1x128xf32, #tpu.memory_space<vmem>>, vector<1x1x128xf32>
    %41 = vector.shape_cast %40 : vector<1x1x128xf32> to vector<1x128xf32>
    %42 = vector.broadcast %41 : vector<1x128xf32> to vector<8x128xf32>
    %43 = arith.addf %39, %42 : vector<8x128xf32>
    %cst_36 = arith.constant 0.000000e+00 : f32
    %44 = vector.broadcast %cst_36 : f32 to vector<8x128xf32>
    %45 = arith.maximumf %43, %44 : vector<8x128xf32>
    %cst_37 = arith.constant 0.000000e+00 : f32
    %46 = vector.broadcast %cst_37 : f32 to vector<8x128xf32>
    %47 = arith.subf %46, %45 : vector<8x128xf32>
    %48 = math.exp %47 : vector<8x128xf32>
    %cst_38 = arith.constant 1.000000e+00 : f32
    %49 = vector.broadcast %cst_38 : f32 to vector<8x128xf32>
    %50 = arith.addf %49, %48 : vector<8x128xf32>
    %51 = tpu.reciprocal %50 {approx = true} : vector<8x128xf32> -> vector<8x128xf32>
    %c0_39 = arith.constant 0 : index
    %c0_40 = arith.constant 0 : index
    %52 = vector.load %arg5[%c0_39, %c0_40] : memref<8x128xf32, #tpu.memory_space<vmem>>, vector<8x128xf32>
    tpu.vector_store %arg5[%c0_39, %c0_40], %51 {strides = array<i32>} : memref<8x128xf32, #tpu.memory_space<vmem>>, vector<8x128xf32>,
    %c0_41 = arith.constant 0 : index
    %c0_42 = arith.constant 0 : index
    %53 = vector.load %arg6[%c0_41, %c0_42] : memref<8x128xf32, #tpu.memory_space<vmem>>, vector<8x128xf32>
    tpu.vector_store %arg6[%c0_41, %c0_42], %25 {strides = array<i32>} : memref<8x128xf32, #tpu.memory_space<vmem>>, vector<8x128xf32>,
    return
  }
  func.func @transform_0(%arg0: i32) -> (i32, i32) {
    %c0_i32 = arith.constant 0 : i32
    %c0_i32_0 = arith.constant 0 : i32
    return %arg0, %c0_i32 : i32, i32
  }
  func.func @transform_1(%arg0: i32) -> (i32, i32) {
    %c0_i32 = arith.constant 0 : i32
    %c0_i32_0 = arith.constant 0 : i32
    return %arg0, %c0_i32 : i32, i32
  }
  func.func @transform_2(%arg0: i32) -> (i32, i32, i32) {
    %c0_i32 = arith.constant 0 : i32
    %c0_i32_0 = arith.constant 0 : i32
    %c0_i32_1 = arith.constant 0 : i32
    %c0_i32_2 = arith.constant 0 : i32
    return %c0_i32, %c0_i32_0, %c0_i32_1 : i32, i32, i32
  }
  func.func @transform_3(%arg0: i32) -> (i32, i32, i32) {
    %c0_i32 = arith.constant 0 : i32
    %c0_i32_0 = arith.constant 0 : i32
    %c0_i32_1 = arith.constant 0 : i32
    %c0_i32_2 = arith.constant 0 : i32
    return %c0_i32, %c0_i32_0, %c0_i32_1 : i32, i32, i32
  }
  func.func @transform_4(%arg0: i32) -> (i32, i32) {
    %c0_i32 = arith.constant 0 : i32
    %c0_i32_0 = arith.constant 0 : i32
    return %arg0, %c0_i32 : i32, i32
  }
  func.func @transform_5(%arg0: i32) -> (i32, i32) {
    %c0_i32 = arith.constant 0 : i32
    %c0_i32_0 = arith.constant 0 : i32
    return %arg0, %c0_i32 : i32, i32
  }
}

</mosaic_0001>

<llo_original>
// kernel: vae_forward.1
$region0: #{vae_forward.1}
  #allocation0 [shape = 'u32[]', space=smem, size = 0x4, offset = 0x4, fixed_abs, tag = 'smem constant byte address 0x4 - core index']
  #allocation1 [shape = 'u32[144,128]{1,0:T(1,128)}', space=vmem, size = 0x12000, scoped, tag = 'internal scratch']
  %s0 = inlined_call_operand.vmem [shape: f32[8,128], index: 0, kind: input, shape index: {}]
  %s1 = inlined_call_operand.vmem [shape: f32[8,128], index: 1, kind: input, shape index: {}]
  %s2 = inlined_call_operand.hbm [shape: f32[5,128,128], index: 2, kind: input, shape index: {}]
  %s3 = inlined_call_operand.vmem [shape: f32[5,1,128], index: 3, kind: input, shape index: {}]
  %s4 = inlined_call_operand.hbm [shape: f32[8,128], index: 4, kind: output, shape index: {0}]
  %s5 = inlined_call_operand.vmem [shape: f32[8,128], index: 5, kind: output, shape index: {1}]
  %6 = xla_tuple %s4, %s5
  %s7 = sld [smem:[#allocation0]]
  $region38: #{vae_forward.1} parent=0
    _
  %s9 = ssub.s32 1, %s7
  %s10 = scalar_select 0, %s9, %s7
  $region1: #{vae_forward.1} parent=0
    #allocation2 [shape = 'u8[327680]{0}', space=vmem, size = 0x50000, scoped, tag = 'input window, operand 2, single buffered']
    #allocation3 [shape = 's32[1]{0}', space=sflag, size = 0x4, scoped, tag = 'scoped memory for vae_forward.1']
    #allocation4 [shape = 's32[1]{0}', space=sflag, size = 0x4, scoped, tag = 'scoped memory for vae_forward.1']
    #allocation5 [shape = 'u8[4096]{0}', space=vmem, size = 0x1000, scoped, tag = 'output window, operand 0, single buffered']
    %11 = vsyncpa [#allocation3], 0
    %12 = vsyncpa [#allocation4], 0
    // Predicated region
    $region2: #{vae_forward.1} parent=1 // pred_check
      _
    $region3: #{vae_forward.1} parent=1 // pred_check_branch
      %14 = sbr.rel (0) target = $region5
    $region4: #{vae_forward.1} parent=1 // pred_region
      _
    $region5: #{vae_forward.1} parent=1 // pred_fallthru
      _
    // Predicated region
    $region6: #{vae_forward.1} parent=1 // pred_check
      _
    $region7: #{vae_forward.1} parent=1 // pred_check_branch
      %16 = sbr.rel (0) target = $region9
    $region8: #{vae_forward.1} parent=1 // pred_region
      _
    $region9: #{vae_forward.1} parent=1 // pred_fallthru
      _
    // Predicated region
    $region10: #{vae_forward.1} parent=1 // pred_check
      _
    $region11: #{vae_forward.1} parent=1 // pred_check_branch
      %18 = sbr.rel (0) target = $region13
    $region12: #{vae_forward.1} parent=1 // pred_region
      %s20 = ssub.s32 10240, 10240
      %21 = vsyncadd [#allocation3], %s20
      %s22 = sshll.u32 [#allocation2], 4
      %s23 = int_to_ptr.vmem [resolvable:$true] %s22
      %28 = dma.hbm_to_vmem [thread:$0]  %s2, 10240, %s23, [#allocation3], 128, 128, 8
    $region13: #{vae_forward.1} parent=1 // pred_fallthru
      _
    // Predicated region
    $region14: #{vae_forward.1} parent=1 // pred_check
      _
    $region15: #{vae_forward.1} parent=1 // pred_check_branch
      %30 = sbr.rel (0) target = $region17
    $region16: #{vae_forward.1} parent=1 // pred_region
      _
    $region17: #{vae_forward.1} parent=1 // pred_fallthru
      _
    // Predicated region
    $region18: #{vae_forward.1} parent=1 // pred_check
      _
    $region19: #{vae_forward.1} parent=1 // pred_check_branch
      %32 = sbr.rel (0) target = $region21
    $region20: #{vae_forward.1} parent=1 // pred_region
      %33 = dma.done [#allocation3], 10240
    $region21: #{vae_forward.1} parent=1 // pred_fallthru
      _
    %v34 = vld [vmem:[%s0] sm:$0xff]
    %v35 = vld [vmem:[#allocation2] sm:$0xff]
    %v36 = vld [vmem:[#allocation2 + $0x8] sm:$0xff]
    %v37 = vld [vmem:[#allocation2 + $0x10] sm:$0xff]
    %v38 = vld [vmem:[#allocation2 + $0x18] sm:$0xff]
    %v39 = vld [vmem:[#allocation2 + $0x20] sm:$0xff]
    %v40 = vld [vmem:[#allocation2 + $0x28] sm:$0xff]
    %v41 = vld [vmem:[#allocation2 + $0x30] sm:$0xff]
    %v42 = vld [vmem:[#allocation2 + $0x38] sm:$0xff]
    %v43 = vld [vmem:[#allocation2 + $0x40] sm:$0xff]
    %v44 = vld [vmem:[#allocation2 + $0x48] sm:$0xff]
    %v45 = vld [vmem:[#allocation2 + $0x50] sm:$0xff]
    %v46 = vld [vmem:[#allocation2 + $0x58] sm:$0xff]
    %v47 = vld [vmem:[#allocation2 + $0x60] sm:$0xff]
    %v48 = vld [vmem:[#allocation2 + $0x68] sm:$0xff]
    %v49 = vld [vmem:[#allocation2 + $0x70] sm:$0xff]
    %v50 = vld [vmem:[#allocation2 + $0x78] sm:$0xff]
    %v51 = vld [vmem:[%s3] sm:$0x1]
    %v53 = vlaneseq
    %v54 = vshrl.u32 %v53, 7
    %v55 = vsub.s32 0, %v54
    %v56 = vrot.slane %v51, %v55
    %58 = vmatprep.subr.mxu0 0.0
    %59 = vmatpush1.msra.mxu0 %v35
    %60 = vmatprep.subr.mxu0 0.0
    %61 = vmatpush1.msra.mxu0 %v36
    %62 = vmatprep.subr.mxu0 0.0
    %63 = vmatpush1.msra.mxu0 %v37
    %64 = vmatprep.subr.mxu0 0.0
    %65 = vmatpush1.msra.mxu0 %v38
    %66 = vmatprep.subr.mxu0 0.0
    %67 = vmatpush1.msra.mxu0 %v39
    %68 = vmatprep.subr.mxu0 0.0
    %69 = vmatpush1.msra.mxu0 %v40
    %70 = vmatprep.subr.mxu0 0.0
    %71 = vmatpush1.msra.mxu0 %v41
    %72 = vmatprep.subr.mxu0 0.0
    %73 = vmatpush1.msra.mxu0 %v42
    %74 = vmatprep.subr.mxu0 0.0
    %75 = vmatpush1.msra.mxu0 %v43
    %76 = vmatprep.subr.mxu0 0.0
    %77 = vmatpush1.msra.mxu0 %v44
    %78 = vmatprep.subr.mxu0 0.0
    %79 = vmatpush1.msra.mxu0 %v45
    %80 = vmatprep.subr.mxu0 0.0
    %81 = vmatpush1.msra.mxu0 %v46
    %82 = vmatprep.subr.mxu0 0.0
    %83 = vmatpush1.msra.mxu0 %v47
    %84 = vmatprep.subr.mxu0 0.0
    %85 = vmatpush1.msra.mxu0 %v48
    %86 = vmatprep.subr.mxu0 0.0
    %87 = vmatpush1.msra.mxu0 %v49
    %88 = vmatprep.subr.mxu0 0.0
    %89 = vmatpush1.msra.mxu0 %v50
    %90 = vmatprep.subr.mxu0 0.0
    %91 = vmatpush1.msra.mxu0 0.0
    %92 = vmatprep.subr.mxu0 0.0
    %93 = vmatpush1.msra.mxu0 0.0
    %94 = vmatprep.subr.mxu0 0.0
    %95 = vmatpush1.msra.mxu0 0.0
    %96 = vmatprep.subr.mxu0 0.0
    %97 = vmatpush1.msra.mxu0 0.0
    %98 = vmatprep.subr.mxu0 0.0
    %99 = vmatpush1.msra.mxu0 0.0
    %100 = vmatprep.subr.mxu0 0.0
    %101 = vmatpush1.msra.mxu0 0.0
    %102 = vmatprep.subr.mxu0 0.0
    %103 = vmatpush1.msra.mxu0 0.0
    %104 = vmatprep.subr.mxu0 0.0
    %105 = vmatpush1.msra.mxu0 0.0
    %106 = vmatprep.subr.mxu0 0.0
    %107 = vmatpush1.msra.mxu0 0.0
    %108 = vmatprep.subr.mxu0 0.0
    %109 = vmatpush1.msra.mxu0 0.0
    %110 = vmatprep.subr.mxu0 0.0
    %111 = vmatpush1.msra.mxu0 0.0
    %112 = vmatprep.subr.mxu0 0.0
    %113 = vmatpush1.msra.mxu0 0.0
    %114 = vmatprep.subr.mxu0 0.0
    %115 = vmatpush1.msra.mxu0 0.0
    %116 = vmatprep.subr.mxu0 0.0
    %117 = vmatpush1.msra.mxu0 0.0
    %118 = vmatprep.subr.mxu0 0.0
    %119 = vmatpush1.msra.mxu0 0.0
    %120 = vmatprep.subr.mxu0 0.0
    %121 = vmatpush1.msra.mxu0 0.0
    %122 = vmatprep.mubr.f32.mxu0 0.0
    %123 = vmatmul.mubr.f32.gmra.mrb[0].mxu0 %v34
    %v124 = vpop.f32.mrb[0].mxu0
    %v125 = vadd.f32 %v56, %v124
    %v126 = vpop.f32.mrb[0].mxu0
    %127 = vdwg.mxu0
    %v128 = vmax.f32 %v125, 0.0
    %s129 = scalar_lea.vmem [#allocation2], 128
    %v130 = vld [vmem:[%s129] sm:$0xff]
    %v131 = vld [vmem:[%s129 + $0x8] sm:$0xff]
    %v132 = vld [vmem:[%s129 + $0x10] sm:$0xff]
    %v133 = vld [vmem:[%s129 + $0x18] sm:$0xff]
    %v134 = vld [vmem:[%s129 + $0x20] sm:$0xff]
    %v135 = vld [vmem:[%s129 + $0x28] sm:$0xff]
    %v136 = vld [vmem:[%s129 + $0x30] sm:$0xff]
    %v137 = vld [vmem:[%s129 + $0x38] sm:$0xff]
    %v138 = vld [vmem:[%s129 + $0x40] sm:$0xff]
    %v139 = vld [vmem:[%s129 + $0x48] sm:$0xff]
    %v140 = vld [vmem:[%s129 + $0x50] sm:$0xff]
    %v141 = vld [vmem:[%s129 + $0x58] sm:$0xff]
    %v142 = vld [vmem:[%s129 + $0x60] sm:$0xff]
    %v143 = vld [vmem:[%s129 + $0x68] sm:$0xff]
    %v144 = vld [vmem:[%s129 + $0x70] sm:$0xff]
    %v145 = vld [vmem:[%s129 + $0x78] sm:$0xff]
    %s146 = scalar_lea.vmem %s3, 1
    %v147 = vld [vmem:[%s146] sm:$0x1]
    %v149 = vlaneseq
    %v150 = vshrl.u32 %v149, 7
    %v151 = vsub.s32 0, %v150
    %v152 = vrot.slane %v147, %v151
    %154 = vmatprep.subr.mxu0 0.0
    %155 = vmatpush1.msra.mxu0 %v130
    %156 = vmatprep.subr.mxu0 0.0
    %157 = vmatpush1.msra.mxu0 %v131
    %158 = vmatprep.subr.mxu0 0.0
    %159 = vmatpush1.msra.mxu0 %v132
    %160 = vmatprep.subr.mxu0 0.0
    %161 = vmatpush1.msra.mxu0 %v133
    %162 = vmatprep.subr.mxu0 0.0
    %163 = vmatpush1.msra.mxu0 %v134
    %164 = vmatprep.subr.mxu0 0.0
    %165 = vmatpush1.msra.mxu0 %v135
    %166 = vmatprep.subr.mxu0 0.0
    %167 = vmatpush1.msra.mxu0 %v136
    %168 = vmatprep.subr.mxu0 0.0
    %169 = vmatpush1.msra.mxu0 %v137
    %170 = vmatprep.subr.mxu0 0.0
    %171 = vmatpush1.msra.mxu0 %v138
    %172 = vmatprep.subr.mxu0 0.0
    %173 = vmatpush1.msra.mxu0 %v139
    %174 = vmatprep.subr.mxu0 0.0
    %175 = vmatpush1.msra.mxu0 %v140
    %176 = vmatprep.subr.mxu0 0.0
    %177 = vmatpush1.msra.mxu0 %v141
    %178 = vmatprep.subr.mxu0 0.0
    %179 = vmatpush1.msra.mxu0 %v142
    %180 = vmatprep.subr.mxu0 0.0
    %181 = vmatpush1.msra.mxu0 %v143
    %182 = vmatprep.subr.mxu0 0.0
    %183 = vmatpush1.msra.mxu0 %v144
    %184 = vmatprep.subr.mxu0 0.0
    %185 = vmatpush1.msra.mxu0 %v145
    %186 = vmatprep.subr.mxu0 0.0
    %187 = vmatpush1.msra.mxu0 0.0
    %188 = vmatprep.subr.mxu0 0.0
    %189 = vmatpush1.msra.mxu0 0.0
    %190 = vmatprep.subr.mxu0 0.0
    %191 = vmatpush1.msra.mxu0 0.0
    %192 = vmatprep.subr.mxu0 0.0
    %193 = vmatpush1.msra.mxu0 0.0
    %194 = vmatprep.subr.mxu0 0.0
    %195 = vmatpush1.msra.mxu0 0.0
    %196 = vmatprep.subr.mxu0 0.0
    %197 = vmatpush1.msra.mxu0 0.0
    %198 = vmatprep.subr.mxu0 0.0
    %199 = vmatpush1.msra.mxu0 0.0
    %200 = vmatprep.subr.mxu0 0.0
    %201 = vmatpush1.msra.mxu0 0.0
    %202 = vmatprep.subr.mxu0 0.0
    %203 = vmatpush1.msra.mxu0 0.0
    %204 = vmatprep.subr.mxu0 0.0
    %205 = vmatpush1.msra.mxu0 0.0
    %206 = vmatprep.subr.mxu0 0.0
    %207 = vmatpush1.msra.mxu0 0.0
    %208 = vmatprep.subr.mxu0 0.0
    %209 = vmatpush1.msra.mxu0 0.0
    %210 = vmatprep.subr.mxu0 0.0
    %211 = vmatpush1.msra.mxu0 0.0
    %212 = vmatprep.subr.mxu0 0.0
    %213 = vmatpush1.msra.mxu0 0.0
    %214 = vmatprep.subr.mxu0 0.0
    %215 = vmatpush1.msra.mxu0 0.0
    %216 = vmatprep.subr.mxu0 0.0
    %217 = vmatpush1.msra.mxu0 0.0
    %218 = vmatprep.mubr.f32.mxu0 0.0
    %219 = vmatmul.mubr.f32.gmra.mrb[0].mxu0 %v128
    %v220 = vpop.f32.mrb[0].mxu0
    %v221 = vadd.f32 %v152, %v220
    %v222 = vpop.f32.mrb[0].mxu0
    %223 = vdwg.mxu0
    %v224 = vmax.f32 %v221, 0.0
    %s225 = scalar_lea.vmem [#allocation2], 256
    %v226 = vld [vmem:[%s225] sm:$0xff]
    %v227 = vld [vmem:[%s225 + $0x8] sm:$0xff]
    %v228 = vld [vmem:[%s225 + $0x10] sm:$0xff]
    %v229 = vld [vmem:[%s225 + $0x18] sm:$0xff]
    %v230 = vld [vmem:[%s225 + $0x20] sm:$0xff]
    %v231 = vld [vmem:[%s225 + $0x28] sm:$0xff]
    %v232 = vld [vmem:[%s225 + $0x30] sm:$0xff]
    %v233 = vld [vmem:[%s225 + $0x38] sm:$0xff]
    %v234 = vld [vmem:[%s225 + $0x40] sm:$0xff]
    %v235 = vld [vmem:[%s225 + $0x48] sm:$0xff]
    %v236 = vld [vmem:[%s225 + $0x50] sm:$0xff]
    %v237 = vld [vmem:[%s225 + $0x58] sm:$0xff]
    %v238 = vld [vmem:[%s225 + $0x60] sm:$0xff]
    %v239 = vld [vmem:[%s225 + $0x68] sm:$0xff]
    %v240 = vld [vmem:[%s225 + $0x70] sm:$0xff]
    %v241 = vld [vmem:[%s225 + $0x78] sm:$0xff]
    %s242 = scalar_lea.vmem %s3, 2
    %v243 = vld [vmem:[%s242] sm:$0x1]
    %v245 = vlaneseq
    %v246 = vshrl.u32 %v245, 7
    %v247 = vsub.s32 0, %v246
    %v248 = vrot.slane %v243, %v247
    %250 = vmatprep.subr.mxu0 0.0
    %251 = vmatpush1.msra.mxu0 %v226
    %252 = vmatprep.subr.mxu0 0.0
    %253 = vmatpush1.msra.mxu0 %v227
    %254 = vmatprep.subr.mxu0 0.0
    %255 = vmatpush1.msra.mxu0 %v228
    %256 = vmatprep.subr.mxu0 0.0
    %257 = vmatpush1.msra.mxu0 %v229
    %258 = vmatprep.subr.mxu0 0.0
    %259 = vmatpush1.msra.mxu0 %v230
    %260 = vmatprep.subr.mxu0 0.0
    %261 = vmatpush1.msra.mxu0 %v231
    %262 = vmatprep.subr.mxu0 0.0
    %263 = vmatpush1.msra.mxu0 %v232
    %264 = vmatprep.subr.mxu0 0.0
    %265 = vmatpush1.msra.mxu0 %v233
    %266 = vmatprep.subr.mxu0 0.0
    %267 = vmatpush1.msra.mxu0 %v234
    %268 = vmatprep.subr.mxu0 0.0
    %269 = vmatpush1.msra.mxu0 %v235
    %270 = vmatprep.subr.mxu0 0.0
    %271 = vmatpush1.msra.mxu0 %v236
    %272 = vmatprep.subr.mxu0 0.0
    %273 = vmatpush1.msra.mxu0 %v237
    %274 = vmatprep.subr.mxu0 0.0
    %275 = vmatpush1.msra.mxu0 %v238
    %276 = vmatprep.subr.mxu0 0.0
    %277 = vmatpush1.msra.mxu0 %v239
    %278 = vmatprep.subr.mxu0 0.0
    %279 = vmatpush1.msra.mxu0 %v240
    %280 = vmatprep.subr.mxu0 0.0
    %281 = vmatpush1.msra.mxu0 %v241
    %282 = vmatprep.subr.mxu0 0.0
    %283 = vmatpush1.msra.mxu0 0.0
    %284 = vmatprep.subr.mxu0 0.0
    %285 = vmatpush1.msra.mxu0 0.0
    %286 = vmatprep.subr.mxu0 0.0
    %287 = vmatpush1.msra.mxu0 0.0
    %288 = vmatprep.subr.mxu0 0.0
    %289 = vmatpush1.msra.mxu0 0.0
    %290 = vmatprep.subr.mxu0 0.0
    %291 = vmatpush1.msra.mxu0 0.0
    %292 = vmatprep.subr.mxu0 0.0
    %293 = vmatpush1.msra.mxu0 0.0
    %294 = vmatprep.subr.mxu0 0.0
    %295 = vmatpush1.msra.mxu0 0.0
    %296 = vmatprep.subr.mxu0 0.0
    %297 = vmatpush1.msra.mxu0 0.0
    %298 = vmatprep.subr.mxu0 0.0
    %299 = vmatpush1.msra.mxu0 0.0
    %300 = vmatprep.subr.mxu0 0.0
    %301 = vmatpush1.msra.mxu0 0.0
    %302 = vmatprep.subr.mxu0 0.0
    %303 = vmatpush1.msra.mxu0 0.0
    %304 = vmatprep.subr.mxu0 0.0
    %305 = vmatpush1.msra.mxu0 0.0
    %306 = vmatprep.subr.mxu0 0.0
    %307 = vmatpush1.msra.mxu0 0.0
    %308 = vmatprep.subr.mxu0 0.0
    %309 = vmatpush1.msra.mxu0 0.0
    %310 = vmatprep.subr.mxu0 0.0
    %311 = vmatpush1.msra.mxu0 0.0
    %312 = vmatprep.subr.mxu0 0.0
    %313 = vmatpush1.msra.mxu0 0.0
    %314 = vmatprep.mubr.f32.mxu0 0.0
    %315 = vmatmul.mubr.f32.gmra.mrb[0].mxu0 %v224
    %v316 = vpop.f32.mrb[0].mxu0
    %v317 = vadd.f32 %v248, %v316
    %v318 = vpop.f32.mrb[0].mxu0
    %319 = vdwg.mxu0
    %v320 = vld [vmem:[%s1] sm:$0xff]
    %v321 = vmul.f32 %v317, %v320
    %s322 = scalar_lea.vmem [#allocation2], 384
    %v323 = vld [vmem:[%s322] sm:$0xff]
    %v324 = vld [vmem:[%s322 + $0x8] sm:$0xff]
    %v325 = vld [vmem:[%s322 + $0x10] sm:$0xff]
    %v326 = vld [vmem:[%s322 + $0x18] sm:$0xff]
    %v327 = vld [vmem:[%s322 + $0x20] sm:$0xff]
    %v328 = vld [vmem:[%s322 + $0x28] sm:$0xff]
    %v329 = vld [vmem:[%s322 + $0x30] sm:$0xff]
    %v330 = vld [vmem:[%s322 + $0x38] sm:$0xff]
    %v331 = vld [vmem:[%s322 + $0x40] sm:$0xff]
    %v332 = vld [vmem:[%s322 + $0x48] sm:$0xff]
    %v333 = vld [vmem:[%s322 + $0x50] sm:$0xff]
    %v334 = vld [vmem:[%s322 + $0x58] sm:$0xff]
    %v335 = vld [vmem:[%s322 + $0x60] sm:$0xff]
    %v336 = vld [vmem:[%s322 + $0x68] sm:$0xff]
    %v337 = vld [vmem:[%s322 + $0x70] sm:$0xff]
    %v338 = vld [vmem:[%s322 + $0x78] sm:$0xff]
    %s339 = scalar_lea.vmem %s3, 3
    %v340 = vld [vmem:[%s339] sm:$0x1]
    %v342 = vlaneseq
    %v343 = vshrl.u32 %v342, 7
    %v344 = vsub.s32 0, %v343
    %v345 = vrot.slane %v340, %v344
    %347 = vmatprep.subr.mxu0 0.0
    %348 = vmatpush1.msra.mxu0 %v323
    %349 = vmatprep.subr.mxu0 0.0
    %350 = vmatpush1.msra.mxu0 %v324
    %351 = vmatprep.subr.mxu0 0.0
    %352 = vmatpush1.msra.mxu0 %v325
    %353 = vmatprep.subr.mxu0 0.0
    %354 = vmatpush1.msra.mxu0 %v326
    %355 = vmatprep.subr.mxu0 0.0
    %356 = vmatpush1.msra.mxu0 %v327
    %357 = vmatprep.subr.mxu0 0.0
    %358 = vmatpush1.msra.mxu0 %v328
    %359 = vmatprep.subr.mxu0 0.0
    %360 = vmatpush1.msra.mxu0 %v329
    %361 = vmatprep.subr.mxu0 0.0
    %362 = vmatpush1.msra.mxu0 %v330
    %363 = vmatprep.subr.mxu0 0.0
    %364 = vmatpush1.msra.mxu0 %v331
    %365 = vmatprep.subr.mxu0 0.0
    %366 = vmatpush1.msra.mxu0 %v332
    %367 = vmatprep.subr.mxu0 0.0
    %368 = vmatpush1.msra.mxu0 %v333
    %369 = vmatprep.subr.mxu0 0.0
    %370 = vmatpush1.msra.mxu0 %v334
    %371 = vmatprep.subr.mxu0 0.0
    %372 = vmatpush1.msra.mxu0 %v335
    %373 = vmatprep.subr.mxu0 0.0
    %374 = vmatpush1.msra.mxu0 %v336
    %375 = vmatprep.subr.mxu0 0.0
    %376 = vmatpush1.msra.mxu0 %v337
    %377 = vmatprep.subr.mxu0 0.0
    %378 = vmatpush1.msra.mxu0 %v338
    %379 = vmatprep.subr.mxu0 0.0
    %380 = vmatpush1.msra.mxu0 0.0
    %381 = vmatprep.subr.mxu0 0.0
    %382 = vmatpush1.msra.mxu0 0.0
    %383 = vmatprep.subr.mxu0 0.0
    %384 = vmatpush1.msra.mxu0 0.0
    %385 = vmatprep.subr.mxu0 0.0
    %386 = vmatpush1.msra.mxu0 0.0
    %387 = vmatprep.subr.mxu0 0.0
    %388 = vmatpush1.msra.mxu0 0.0
    %389 = vmatprep.subr.mxu0 0.0
    %390 = vmatpush1.msra.mxu0 0.0
    %391 = vmatprep.subr.mxu0 0.0
    %392 = vmatpush1.msra.mxu0 0.0
    %393 = vmatprep.subr.mxu0 0.0
    %394 = vmatpush1.msra.mxu0 0.0
    %395 = vmatprep.subr.mxu0 0.0
    %396 = vmatpush1.msra.mxu0 0.0
    %397 = vmatprep.subr.mxu0 0.0
    %398 = vmatpush1.msra.mxu0 0.0
    %399 = vmatprep.subr.mxu0 0.0
    %400 = vmatpush1.msra.mxu0 0.0
    %401 = vmatprep.subr.mxu0 0.0
    %402 = vmatpush1.msra.mxu0 0.0
    %403 = vmatprep.subr.mxu0 0.0
    %404 = vmatpush1.msra.mxu0 0.0
    %405 = vmatprep.subr.mxu0 0.0
    %406 = vmatpush1.msra.mxu0 0.0
    %407 = vmatprep.subr.mxu0 0.0
    %408 = vmatpush1.msra.mxu0 0.0
    %409 = vmatprep.subr.mxu0 0.0
    %410 = vmatpush1.msra.mxu0 0.0
    %411 = vmatprep.mubr.f32.mxu0 0.0
    %412 = vmatmul.mubr.f32.gmra.mrb[0].mxu0 %v321
    %v413 = vpop.f32.mrb[0].mxu0
    %v414 = vadd.f32 %v345, %v413
    %v415 = vpop.f32.mrb[0].mxu0
    %416 = vdwg.mxu0
    %v417 = vmax.f32 %v414, 0.0
    %s418 = scalar_lea.vmem [#allocation2], 512
    %v419 = vld [vmem:[%s418] sm:$0xff]
    %v420 = vld [vmem:[%s418 + $0x8] sm:$0xff]
    %v421 = vld [vmem:[%s418 + $0x10] sm:$0xff]
    %v422 = vld [vmem:[%s418 + $0x18] sm:$0xff]
    %v423 = vld [vmem:[%s418 + $0x20] sm:$0xff]
    %v424 = vld [vmem:[%s418 + $0x28] sm:$0xff]
    %v425 = vld [vmem:[%s418 + $0x30] sm:$0xff]
    %v426 = vld [vmem:[%s418 + $0x38] sm:$0xff]
    %v427 = vld [vmem:[%s418 + $0x40] sm:$0xff]
    %v428 = vld [vmem:[%s418 + $0x48] sm:$0xff]
    %v429 = vld [vmem:[%s418 + $0x50] sm:$0xff]
    %v430 = vld [vmem:[%s418 + $0x58] sm:$0xff]
    %v431 = vld [vmem:[%s418 + $0x60] sm:$0xff]
    %v432 = vld [vmem:[%s418 + $0x68] sm:$0xff]
    %v433 = vld [vmem:[%s418 + $0x70] sm:$0xff]
    %v434 = vld [vmem:[%s418 + $0x78] sm:$0xff]
    %s435 = scalar_lea.vmem %s3, 4
    %v436 = vld [vmem:[%s435] sm:$0x1]
    %v438 = vlaneseq
    %v439 = vshrl.u32 %v438, 7
    %v440 = vsub.s32 0, %v439
    %v441 = vrot.slane %v436, %v440
    %443 = vmatprep.subr.mxu0 0.0
    %444 = vmatpush1.msra.mxu0 %v419
    %445 = vmatprep.subr.mxu0 0.0
    %446 = vmatpush1.msra.mxu0 %v420
    %447 = vmatprep.subr.mxu0 0.0
    %448 = vmatpush1.msra.mxu0 %v421
    %449 = vmatprep.subr.mxu0 0.0
    %450 = vmatpush1.msra.mxu0 %v422
    %451 = vmatprep.subr.mxu0 0.0
    %452 = vmatpush1.msra.mxu0 %v423
    %453 = vmatprep.subr.mxu0 0.0
    %454 = vmatpush1.msra.mxu0 %v424
    %455 = vmatprep.subr.mxu0 0.0
    %456 = vmatpush1.msra.mxu0 %v425
    %457 = vmatprep.subr.mxu0 0.0
    %458 = vmatpush1.msra.mxu0 %v426
    %459 = vmatprep.subr.mxu0 0.0
    %460 = vmatpush1.msra.mxu0 %v427
    %461 = vmatprep.subr.mxu0 0.0
    %462 = vmatpush1.msra.mxu0 %v428
    %463 = vmatprep.subr.mxu0 0.0
    %464 = vmatpush1.msra.mxu0 %v429
    %465 = vmatprep.subr.mxu0 0.0
    %466 = vmatpush1.msra.mxu0 %v430
    %467 = vmatprep.subr.mxu0 0.0
    %468 = vmatpush1.msra.mxu0 %v431
    %469 = vmatprep.subr.mxu0 0.0
    %470 = vmatpush1.msra.mxu0 %v432
    %471 = vmatprep.subr.mxu0 0.0
    %472 = vmatpush1.msra.mxu0 %v433
    %473 = vmatprep.subr.mxu0 0.0
    %474 = vmatpush1.msra.mxu0 %v434
    %475 = vmatprep.subr.mxu0 0.0
    %476 = vmatpush1.msra.mxu0 0.0
    %477 = vmatprep.subr.mxu0 0.0
    %478 = vmatpush1.msra.mxu0 0.0
    %479 = vmatprep.subr.mxu0 0.0
    %480 = vmatpush1.msra.mxu0 0.0
    %481 = vmatprep.subr.mxu0 0.0
    %482 = vmatpush1.msra.mxu0 0.0
    %483 = vmatprep.subr.mxu0 0.0
    %484 = vmatpush1.msra.mxu0 0.0
    %485 = vmatprep.subr.mxu0 0.0
    %486 = vmatpush1.msra.mxu0 0.0
    %487 = vmatprep.subr.mxu0 0.0
    %488 = vmatpush1.msra.mxu0 0.0
    %489 = vmatprep.subr.mxu0 0.0
    %490 = vmatpush1.msra.mxu0 0.0
    %491 = vmatprep.subr.mxu0 0.0
    %492 = vmatpush1.msra.mxu0 0.0
    %493 = vmatprep.subr.mxu0 0.0
    %494 = vmatpush1.msra.mxu0 0.0
    %495 = vmatprep.subr.mxu0 0.0
    %496 = vmatpush1.msra.mxu0 0.0
    %497 = vmatprep.subr.mxu0 0.0
    %498 = vmatpush1.msra.mxu0 0.0
    %499 = vmatprep.subr.mxu0 0.0
    %500 = vmatpush1.msra.mxu0 0.0
    %501 = vmatprep.subr.mxu0 0.0
    %502 = vmatpush1.msra.mxu0 0.0
    %503 = vmatprep.subr.mxu0 0.0
    %504 = vmatpush1.msra.mxu0 0.0
    %505 = vmatprep.subr.mxu0 0.0
    %506 = vmatpush1.msra.mxu0 0.0
    %507 = vmatprep.mubr.f32.mxu0 0.0
    %508 = vmatmul.mubr.f32.gmra.mrb[0].mxu0 %v417
    %v509 = vpop.f32.mrb[0].mxu0
    %v510 = vadd.f32 %v441, %v509
    %v511 = vpop.f32.mrb[0].mxu0
    %512 = vdwg.mxu0
    %v513 = vmax.f32 %v510, 0.0
    %v514 = vsub.f32 0.0, %v513
    %v515 = vmul.f32 %v514, 1.442695
    %v516 = vpow.pop %v515
    %v517 = vadd.f32 %v516, 1.0
    %v518 = vrcp.pop %v517
    %519 = vst [vmem:[#allocation5] sm:$0xff] %v518
    %520 = vst [vmem:[%s5] sm:$0xff] %v317
    // Predicated region
    $region22: #{vae_forward.1} parent=1 // pred_check
      _
    $region23: #{vae_forward.1} parent=1 // pred_check_branch
      %522 = sbr.rel (0) target = $region25
    $region24: #{vae_forward.1} parent=1 // pred_region
      %s524 = ssub.s32 128, 128
      %525 = vsyncadd [#allocation4], %s524
      %s527 = sshll.u32 [#allocation5], 4
      %s528 = int_to_ptr.vmem [resolvable:$true] %s527
      %530 = dma.vmem_to_hbm [thread:$0]  %s528, 128, %s4, [#allocation4]
    $region25: #{vae_forward.1} parent=1 // pred_fallthru
      _
    // Predicated region
    $region26: #{vae_forward.1} parent=1 // pred_check
      _
    $region27: #{vae_forward.1} parent=1 // pred_check_branch
      %532 = sbr.rel (0) target = $region29
    $region28: #{vae_forward.1} parent=1 // pred_region
      _
    $region29: #{vae_forward.1} parent=1 // pred_fallthru
      _
    // Predicated region
    $region30: #{vae_forward.1} parent=1 // pred_check
      _
    $region31: #{vae_forward.1} parent=1 // pred_check_branch
      %534 = sbr.rel (0) target = $region33
    $region32: #{vae_forward.1} parent=1 // pred_region
      %535 = dma.done [#allocation4], 128
    $region33: #{vae_forward.1} parent=1 // pred_fallthru
      _
    // Predicated region
    $region34: #{vae_forward.1} parent=1 // pred_check
      _
    $region35: #{vae_forward.1} parent=1 // pred_check_branch
      %537 = sbr.rel (0) target = $region37
    $region36: #{vae_forward.1} parent=1 // pred_region
      _
    $region37: #{vae_forward.1} parent=1 // pred_fallthru
      _
    %538 = vsyncpa [#allocation3], 1
    %539 = vsyncpa [#allocation4], 1

</llo_original>
